<compile_context>
chip_gen: v7x
topology: tpu7x:2x2x1
jax: 0.10.0
libtpu: 0.0.40
codegen_flags: <defaults>
</compile_context>

<pallas_src>
import jax
import jax.numpy as jnp
from jax import lax
from jax.experimental import pallas as pl
from jax.experimental.pallas import tpu as pltpu

HIDDEN = 100          # true hidden width of the PyTorch module
HIDDEN_PAD = 128      # lane-dense padded hidden width
BN_EPS = 1e-5
LANE = 128
SUBLANE = 8
DEFAULT_TILE_B = 512  # batch rows per tile (re-derive downward for v7x VMEM)


def _round_up(n, m):
    return ((n + m - 1) // m) * m


# --------------------------------------------------------------------------
# Pass 1: fc1 -> relu -> fc2 -> relu -> fc3 per batch tile; stash h3 to HBM
# and accumulate masked per-feature sum / sumsq (resident accumulator outputs).
# --------------------------------------------------------------------------
def _phase1_kernel(b_true_ref, x_ref, w1_ref, b1_ref, w2_ref, b2_ref,
                   w3_ref, b3_ref, h3_ref, sum_ref, sq_ref):
    i = pl.program_id(0)

    @pl.when(i == 0)
    def _():
        sum_ref[...] = jnp.zeros_like(sum_ref)
        sq_ref[...] = jnp.zeros_like(sq_ref)

    # Hoisted parameter loads (VMEM-resident across the grid).
    w1 = w1_ref[...]; w2 = w2_ref[...]; w3 = w3_ref[...]
    b1 = b1_ref[...]; b2 = b2_ref[...]; b3 = b3_ref[...]
    cdt = w1.dtype  # MXU operand dtype (bf16 recommended on all chips)

    x = x_ref[...].astype(cdt)
    h1 = jnp.maximum(
        jnp.dot(x, w1, preferred_element_type=jnp.float32) + b1, 0.0)
    h2 = jnp.maximum(
        jnp.dot(h1.astype(cdt), w2, preferred_element_type=jnp.float32) + b2, 0.0)
    h3 = jnp.dot(h2.astype(cdt), w3, preferred_element_type=jnp.float32) + b3

    h3_ref[...] = h3  # f32 stash for the BN-apply pass

    # Mask rows beyond the true batch (only bites in the last tile): a single
    # select per vreg instead of an f32 mask slab + two multiplies.
    tile_b, feat = h3.shape
    n_true = b_true_ref[0]
    row = lax.broadcasted_iota(jnp.int32, (tile_b, feat), 0) + i * tile_b
    h3m = jnp.where(row < n_true, h3, 0.0)
    sum_ref[...] += jnp.sum(h3m, axis=0, keepdims=True)
    sq_ref[...] += jnp.sum(h3m * h3m, axis=0, keepdims=True)


# --------------------------------------------------------------------------
# Pass 2: fold BN into one per-feature scale/shift, relu, fc4 per batch tile.
# --------------------------------------------------------------------------
def _phase2_kernel(b_true_ref, h3_ref, sum_ref, sq_ref, gamma_ref, beta_ref,
                   w4_ref, b4_ref, out_ref):
    n = b_true_ref[0].astype(jnp.float32)
    mean = sum_ref[...] / n
    var = jnp.maximum(sq_ref[...] / n - mean * mean, 0.0)   # biased (PyTorch fwd)
    scale = gamma_ref[...] * lax.rsqrt(var + BN_EPS)
    shift = beta_ref[...] - mean * scale

    h3bn = jnp.maximum(h3_ref[...] * scale + shift, 0.0)
    cdt = w4_ref.dtype
    out_ref[...] = (jnp.dot(h3bn.astype(cdt), w4_ref[...],
                            preferred_element_type=jnp.float32)
                    + b4_ref[...]).astype(out_ref.dtype)


# --------------------------------------------------------------------------
# Wrapper
# --------------------------------------------------------------------------
def dqn_forward(x, pparams, out_size, *, tile_b=DEFAULT_TILE_B):
    """Batch-tiled two-pass DQN forward on lane-dense padded params."""
    B, in_dim = x.shape
    tile_b = min(tile_b, _round_up(max(B, SUBLANE), SUBLANE))
    B_pad = _round_up(max(B, tile_b), tile_b)
    if B_pad != B:
        x = jnp.pad(x, ((0, B_pad - B), (0, 0)))
    n_tiles = B_pad // tile_b
    out_pad = pparams["w4"].shape[1]
    wbytes = jnp.dtype(pparams["w1"].dtype).itemsize
    b_true = jnp.array([B], jnp.int32)   # scalar prefetch: no recompile per batch

    def resident(shape):
        return pl.BlockSpec(shape, lambda i, n: (0, 0))

    def vmem_limit(nbytes):
        return int(min(max(nbytes, 16 << 20), 64 << 20))

    # ---- pass 1: fc1..fc3 + masked sum/sumsq over an "arbitrary" batch axis --
    w_bytes1 = (in_dim * HIDDEN_PAD + 2 * HIDDEN_PAD * HIDDEN_PAD
                + 3 * HIDDEN_PAD) * wbytes
    cost1 = pl.CostEstimate(
        flops=2 * B_pad * (in_dim + 2 * HIDDEN_PAD) * HIDDEN_PAD,
        transcendentals=0,
        bytes_accessed=B_pad * (in_dim + HIDDEN_PAD) * 4 + w_bytes1)
    vmem1 = (2 * tile_b * (in_dim + HIDDEN_PAD) * 4   # double-buffered x / h3 tiles
             + 4 * tile_b * HIDDEN_PAD * 4            # live f32 activation slabs
             + 2 * w_bytes1 + (2 << 20))

    h3, s_sum, s_sq = pl.pallas_call(
        _phase1_kernel,
        out_shape=(jax.ShapeDtypeStruct((B_pad, HIDDEN_PAD), jnp.float32),
                   jax.ShapeDtypeStruct((1, HIDDEN_PAD), jnp.float32),
                   jax.ShapeDtypeStruct((1, HIDDEN_PAD), jnp.float32)),
        grid_spec=pltpu.PrefetchScalarGridSpec(
            num_scalar_prefetch=1,
            grid=(n_tiles,),
            in_specs=[
                pl.BlockSpec((tile_b, in_dim), lambda i, n: (i, 0)),
                resident((in_dim, HIDDEN_PAD)), resident((1, HIDDEN_PAD)),
                resident((HIDDEN_PAD, HIDDEN_PAD)), resident((1, HIDDEN_PAD)),
                resident((HIDDEN_PAD, HIDDEN_PAD)), resident((1, HIDDEN_PAD)),
            ],
            out_specs=[
                pl.BlockSpec((tile_b, HIDDEN_PAD), lambda i, n: (i, 0)),
                resident((1, HIDDEN_PAD)),
                resident((1, HIDDEN_PAD)),
            ]),
        compiler_params=pltpu.CompilerParams(
            dimension_semantics=("arbitrary",),     # resident sum/sumsq accumulator
            vmem_limit_bytes=vmem_limit(vmem1)),
        cost_estimate=cost1,
    )(b_true, x,
      pparams["w1"], pparams["b1"],
      pparams["w2"], pparams["b2"],
      pparams["w3"], pparams["b3"])

    # ---- pass 2: BN(scale/shift) + relu + fc4 over a "parallel" batch axis ---
    w_bytes2 = (HIDDEN_PAD * out_pad + out_pad) * wbytes + 4 * HIDDEN_PAD * 4
    cost2 = pl.CostEstimate(
        flops=2 * B_pad * HIDDEN_PAD * out_pad + 4 * B_pad * HIDDEN_PAD,
        transcendentals=HIDDEN_PAD,
        bytes_accessed=B_pad * (HIDDEN_PAD + out_pad) * 4 + w_bytes2)
    vmem2 = (2 * tile_b * (HIDDEN_PAD + out_pad) * 4
             + 2 * tile_b * HIDDEN_PAD * 4
             + 2 * w_bytes2 + (2 << 20))

    out = pl.pallas_call(
        _phase2_kernel,
        out_shape=jax.ShapeDtypeStruct((B_pad, out_pad), jnp.float32),
        grid_spec=pltpu.PrefetchScalarGridSpec(
            num_scalar_prefetch=1,
            grid=(n_tiles,),
            in_specs=[
                pl.BlockSpec((tile_b, HIDDEN_PAD), lambda i, n: (i, 0)),
                resident((1, HIDDEN_PAD)), resident((1, HIDDEN_PAD)),
                resident((1, HIDDEN_PAD)), resident((1, HIDDEN_PAD)),
                resident((HIDDEN_PAD, out_pad)), resident((1, out_pad)),
            ],
            out_specs=pl.BlockSpec((tile_b, out_pad), lambda i, n: (i, 0))),
        compiler_params=pltpu.CompilerParams(
            dimension_semantics=("parallel",),      # megacore sharding on v7x
            vmem_limit_bytes=vmem_limit(vmem2)),
        cost_estimate=cost2,
    )(b_true, h3, s_sum, s_sq,
      pparams["gamma"], pparams["beta"], pparams["w4"], pparams["b4"])

    return out[:B, :out_size]


# --------------------------------------------------------------------------
# Params (PyTorch nn.Linear default init), lane-dense padding, reference.
# --------------------------------------------------------------------------
def init_params(key, input_size, output_size):
    def linear(key, fan_in, fan_out):
        kw, kb = jax.random.split(key)
        bound = 1.0 / jnp.sqrt(jnp.float32(fan_in))
        w = jax.random.uniform(kw, (fan_in, fan_out), jnp.float32, -bound, bound)
        b = jax.random.uniform(kb, (1, fan_out), jnp.float32, -bound, bound)
        return w, b

    k1, k2, k3, k4 = jax.random.split(key, 4)
    w1, b1 = linear(k1, input_size, HIDDEN)
    w2, b2 = linear(k2, HIDDEN, HIDDEN)
    w3, b3 = linear(k3, HIDDEN, HIDDEN)
    w4, b4 = linear(k4, HIDDEN, output_size)
    return {"w1": w1, "b1": b1, "w2": w2, "b2": b2, "w3": w3, "b3": b3,
            "gamma": jnp.ones((1, HIDDEN), jnp.float32),
            "beta": jnp.zeros((1, HIDDEN), jnp.float32),
            "w4": w4, "b4": b4}


def pad_params(p, out_size, weight_dtype=jnp.bfloat16):
    """Zero-pad to lane-dense shapes (HIDDEN->128, out->mult of 128); exact."""
    out_pad = _round_up(out_size, LANE)

    def padw(w, rows, cols):
        w = jnp.pad(w, ((0, rows - w.shape[0]), (0, cols - w.shape[1])))
        return w.astype(weight_dtype)

    def padv(v, cols):
        return jnp.pad(v, ((0, 0), (0, cols - v.shape[1]))).astype(jnp.float32)

    in_size = p["w1"].shape[0]
    return {
        "w1": padw(p["w1"], in_size, HIDDEN_PAD), "b1": padv(p["b1"], HIDDEN_PAD),
        "w2": padw(p["w2"], HIDDEN_PAD, HIDDEN_PAD), "b2": padv(p["b2"], HIDDEN_PAD),
        "w3": padw(p["w3"], HIDDEN_PAD, HIDDEN_PAD), "b3": padv(p["b3"], HIDDEN_PAD),
        "gamma": padv(p["gamma"], HIDDEN_PAD),   # padded gamma entries are 0
        "beta": padv(p["beta"], HIDDEN_PAD),
        "w4": padw(p["w4"], HIDDEN_PAD, out_pad), "b4": padv(p["b4"], out_pad),
    }


def dqn_reference(x, p):
    h1 = jnp.maximum(x @ p["w1"] + p["b1"], 0.0)
    h2 = jnp.maximum(h1 @ p["w2"] + p["b2"], 0.0)
    h3 = h2 @ p["w3"] + p["b3"]
    mean = jnp.mean(h3, axis=0, keepdims=True)
    var = jnp.mean((h3 - mean) ** 2, axis=0, keepdims=True)
    h3bn = jnp.maximum((h3 - mean) / jnp.sqrt(var + BN_EPS) * p["gamma"]
                       + p["beta"], 0.0)
    return h3bn @ p["w4"] + p["b4"]


if __name__ == "__main__":
    key = jax.random.PRNGKey(0)
    kx, kp, kx2 = jax.random.split(key, 3)

    input_size, output_size = 16, 4
    params = init_params(kp, input_size, output_size)

    # B=6: exercises sublane padding + masked BN statistics (padded to 8 rows).
    x = jax.random.normal(kx, (6, input_size), jnp.float32)
    ref = dqn_reference(x, params)
    out = jax.block_until_ready(
        dqn_forward(x, pad_params(params, output_size, jnp.float32), output_size))
    assert out.shape == (6, output_size)
    assert jnp.allclose(out, ref, atol=1e-3, rtol=1e-3), (out, ref)

    # B=300, TILE_B=128: exercises cross-tile sum/sumsq accumulation and the
    # last-tile mask (rows 300..383 are padding).
    x2 = jax.random.normal(kx2, (300, input_size), jnp.float32)
    ref2 = dqn_reference(x2, params)
    out2 = jax.block_until_ready(
        dqn_forward(x2, pad_params(params, output_size, jnp.float32),
                    output_size, tile_b=128))
    assert out2.shape == (300, output_size)
    assert jnp.allclose(out2, ref2, atol=1e-3, rtol=1e-3), (out2, ref2)

    # bf16 MXU operands (recommended on all chips, v5e included); f32
    # accumulation + f32 BN epilogue keep numerics close.
    out_bf16 = jax.block_until_ready(
        dqn_forward(x2, pad_params(params, output_size, jnp.bfloat16),
                    output_size, tile_b=128))
    assert out_bf16.shape == (300, output_size)
    assert jnp.allclose(out_bf16, ref2, atol=1e-1, rtol=1e-1), (out_bf16, ref2)

    print("KERNEL_OK")
</pallas_src>

<mosaic_0001>
module attributes {stable_mosaic.version = 11 : i64} {
  func.func @_phase1_kernel(%arg0: i32, %arg1: memref<1xi32, #tpu.memory_space<smem>>, %arg2: memref<8x16xf32, #tpu.memory_space<vmem>>, %arg3: memref<16x128xf32, #tpu.memory_space<vmem>>, %arg4: memref<1x128xf32, #tpu.memory_space<vmem>>, %arg5: memref<128x128xf32, #tpu.memory_space<vmem>>, %arg6: memref<1x128xf32, #tpu.memory_space<vmem>>, %arg7: memref<128x128xf32, #tpu.memory_space<vmem>>, %arg8: memref<1x128xf32, #tpu.memory_space<vmem>>, %arg9: memref<8x128xf32, #tpu.memory_space<vmem>>, %arg10: memref<1x128xf32, #tpu.memory_space<vmem>>, %arg11: memref<1x128xf32, #tpu.memory_space<vmem>>) attributes {dimension_semantics = [#tpu.dimension_semantics<arbitrary>], iteration_bounds = array<i64: 1>, scalar_prefetch = 1 : i64, scratch_operands = 0 : i64, tpu.core_type = #tpu.core_type<tc>, window_params = [{transform_indices = @transform_0, window_bounds = array<i64: 8, 16>}, {pipeline_mode = #tpu.pipeline_mode<synchronous>, transform_indices = @transform_1, window_bounds = array<i64: 16, 128>}, {pipeline_mode = #tpu.pipeline_mode<synchronous>, transform_indices = @transform_2, window_bounds = array<i64: 1, 128>}, {pipeline_mode = #tpu.pipeline_mode<synchronous>, transform_indices = @transform_3, window_bounds = array<i64: 128, 128>}, {pipeline_mode = #tpu.pipeline_mode<synchronous>, transform_indices = @transform_4, window_bounds = array<i64: 1, 128>}, {pipeline_mode = #tpu.pipeline_mode<synchronous>, transform_indices = @transform_5, window_bounds = array<i64: 128, 128>}, {pipeline_mode = #tpu.pipeline_mode<synchronous>, transform_indices = @transform_6, window_bounds = array<i64: 1, 128>}, {transform_indices = @transform_7, window_bounds = array<i64: 8, 128>}, {pipeline_mode = #tpu.pipeline_mode<synchronous>, transform_indices = @transform_8, window_bounds = array<i64: 1, 128>}, {pipeline_mode = #tpu.pipeline_mode<synchronous>, transform_indices = @transform_9, window_bounds = array<i64: 1, 128>}]} {
    %c0_i32 = arith.constant 0 : i32
    %0 = arith.cmpi eq, %arg0, %c0_i32 : i32
    %1 = arith.extui %0 : i1 to i32
    %c0_i32_0 = arith.constant 0 : i32
    %2 = arith.cmpi ne, %1, %c0_i32_0 : i32
    scf.if %2 {
      %cst_32 = arith.constant 0.000000e+00 : f32
      %44 = vector.broadcast %cst_32 : f32 to vector<1x128xf32>
      %c0_33 = arith.constant 0 : index
      %c0_34 = arith.constant 0 : index
      %45 = vector.load %arg10[%c0_33, %c0_34] : memref<1x128xf32, #tpu.memory_space<vmem>>, vector<1x128xf32>
      tpu.vector_store %arg10[%c0_33, %c0_34], %44 {strides = array<i32>} : memref<1x128xf32, #tpu.memory_space<vmem>>, vector<1x128xf32>,
      %cst_35 = arith.constant 0.000000e+00 : f32
      %46 = vector.broadcast %cst_35 : f32 to vector<1x128xf32>
      %c0_36 = arith.constant 0 : index
      %c0_37 = arith.constant 0 : index
      %47 = vector.load %arg11[%c0_36, %c0_37] : memref<1x128xf32, #tpu.memory_space<vmem>>, vector<1x128xf32>
      tpu.vector_store %arg11[%c0_36, %c0_37], %46 {strides = array<i32>} : memref<1x128xf32, #tpu.memory_space<vmem>>, vector<1x128xf32>,
    } else {
    }
    %c0 = arith.constant 0 : index
    %c0_1 = arith.constant 0 : index
    %3 = vector.load %arg3[%c0, %c0_1] : memref<16x128xf32, #tpu.memory_space<vmem>>, vector<16x128xf32>
    %c0_2 = arith.constant 0 : index
    %c0_3 = arith.constant 0 : index
    %4 = vector.load %arg5[%c0_2, %c0_3] : memref<128x128xf32, #tpu.memory_space<vmem>>, vector<128x128xf32>
    %c0_4 = arith.constant 0 : index
    %c0_5 = arith.constant 0 : index
    %5 = vector.load %arg7[%c0_4, %c0_5] : memref<128x128xf32, #tpu.memory_space<vmem>>, vector<128x128xf32>
    %c0_6 = arith.constant 0 : index
    %c0_7 = arith.constant 0 : index
    %6 = vector.load %arg4[%c0_6, %c0_7] : memref<1x128xf32, #tpu.memory_space<vmem>>, vector<1x128xf32>
    %c0_8 = arith.constant 0 : index
    %c0_9 = arith.constant 0 : index
    %7 = vector.load %arg6[%c0_8, %c0_9] : memref<1x128xf32, #tpu.memory_space<vmem>>, vector<1x128xf32>
    %c0_10 = arith.constant 0 : index
    %c0_11 = arith.constant 0 : index
    %8 = vector.load %arg8[%c0_10, %c0_11] : memref<1x128xf32, #tpu.memory_space<vmem>>, vector<1x128xf32>
    %c0_12 = arith.constant 0 : index
    %c0_13 = arith.constant 0 : index
    %9 = vector.load %arg2[%c0_12, %c0_13] : memref<8x16xf32, #tpu.memory_space<vmem>>, vector<8x16xf32>
    %cst = arith.constant dense<0.000000e+00> : vector<8x128xf32>
    %10 = tpu.matmul %9, %3, %cst {dimension_numbers = #tpu.dot_dimension_numbers<[1], [0], [0], [1], [0, 0, 1, 1], [], []>} : vector<8x16xf32>, vector<16x128xf32>, vector<8x128xf32> -> vector<8x128xf32>
    %11 = vector.broadcast %6 : vector<1x128xf32> to vector<8x128xf32>
    %12 = arith.addf %10, %11 : vector<8x128xf32>
    %cst_14 = arith.constant 0.000000e+00 : f32
    %13 = vector.broadcast %cst_14 : f32 to vector<8x128xf32>
    %14 = arith.maximumf %12, %13 : vector<8x128xf32>
    %cst_15 = arith.constant dense<0.000000e+00> : vector<8x128xf32>
    %15 = tpu.matmul %14, %4, %cst_15 {dimension_numbers = #tpu.dot_dimension_numbers<[1], [0], [0], [1], [0, 0, 1, 1], [], []>} : vector<8x128xf32>, vector<128x128xf32>, vector<8x128xf32> -> vector<8x128xf32>
    %16 = vector.broadcast %7 : vector<1x128xf32> to vector<8x128xf32>
    %17 = arith.addf %15, %16 : vector<8x128xf32>
    %cst_16 = arith.constant 0.000000e+00 : f32
    %18 = vector.broadcast %cst_16 : f32 to vector<8x128xf32>
    %19 = arith.maximumf %17, %18 : vector<8x128xf32>
    %cst_17 = arith.constant dense<0.000000e+00> : vector<8x128xf32>
    %20 = tpu.matmul %19, %5, %cst_17 {dimension_numbers = #tpu.dot_dimension_numbers<[1], [0], [0], [1], [0, 0, 1, 1], [], []>} : vector<8x128xf32>, vector<128x128xf32>, vector<8x128xf32> -> vector<8x128xf32>
    %21 = vector.broadcast %8 : vector<1x128xf32> to vector<8x128xf32>
    %22 = arith.addf %20, %21 : vector<8x128xf32>
    %c0_18 = arith.constant 0 : index
    %c0_19 = arith.constant 0 : index
    %23 = vector.load %arg9[%c0_18, %c0_19] : memref<8x128xf32, #tpu.memory_space<vmem>>, vector<8x128xf32>
    tpu.vector_store %arg9[%c0_18, %c0_19], %22 {strides = array<i32>} : memref<8x128xf32, #tpu.memory_space<vmem>>, vector<8x128xf32>,
    %c0_20 = arith.constant 0 : index
    %24 = memref.load %arg1[%c0_20] : memref<1xi32, #tpu.memory_space<smem>>
    %25 = tpu.iota {dimensions = array<i32: 0>} : vector<8x128xi32>
    %c8_i32 = arith.constant 8 : i32
    %26 = arith.muli %arg0, %c8_i32 : i32
    %27 = vector.broadcast %26 : i32 to vector<8x128xi32>
    %28 = arith.addi %25, %27 : vector<8x128xi32>
    %29 = vector.broadcast %24 : i32 to vector<8x128xi32>
    %30 = arith.cmpi slt, %28, %29 : vector<8x128xi32>
    %cst_21 = arith.constant 0.000000e+00 : f32
    %31 = vector.broadcast %cst_21 : f32 to vector<8x128xf32>
    %32 = arith.select %30, %22, %31 : vector<8x128xi1>, vector<8x128xf32>
    %c0_22 = arith.constant 0 : index
    %c0_23 = arith.constant 0 : index
    %33 = vector.load %arg10[%c0_22, %c0_23] : memref<1x128xf32, #tpu.memory_space<vmem>>, vector<1x128xf32>
    %cst_24 = arith.constant dense<0.000000e+00> : vector<128xf32>
    %34 = vector.multi_reduction <add>, %32, %cst_24 [0] : vector<8x128xf32> to vector<128xf32>
    %35 = vector.shape_cast %34 : vector<128xf32> to vector<1x128xf32>
    %36 = arith.addf %33, %35 : vector<1x128xf32>
    %c0_25 = arith.constant 0 : index
    %c0_26 = arith.constant 0 : index
    %37 = vector.load %arg10[%c0_25, %c0_26] : memref<1x128xf32, #tpu.memory_space<vmem>>, vector<1x128xf32>
    tpu.vector_store %arg10[%c0_25, %c0_26], %36 {strides = array<i32>} : memref<1x128xf32, #tpu.memory_space<vmem>>, vector<1x128xf32>,
    %c0_27 = arith.constant 0 : index
    %c0_28 = arith.constant 0 : index
    %38 = vector.load %arg11[%c0_27, %c0_28] : memref<1x128xf32, #tpu.memory_space<vmem>>, vector<1x128xf32>
    %39 = arith.mulf %32, %32 : vector<8x128xf32>
    %cst_29 = arith.constant dense<0.000000e+00> : vector<128xf32>
    %40 = vector.multi_reduction <add>, %39, %cst_29 [0] : vector<8x128xf32> to vector<128xf32>
    %41 = vector.shape_cast %40 : vector<128xf32> to vector<1x128xf32>
    %42 = arith.addf %38, %41 : vector<1x128xf32>
    %c0_30 = arith.constant 0 : index
    %c0_31 = arith.constant 0 : index
    %43 = vector.load %arg11[%c0_30, %c0_31] : memref<1x128xf32, #tpu.memory_space<vmem>>, vector<1x128xf32>
    tpu.vector_store %arg11[%c0_30, %c0_31], %42 {strides = array<i32>} : memref<1x128xf32, #tpu.memory_space<vmem>>, vector<1x128xf32>,
    return
  }
  func.func @transform_0(%arg0: i32, %arg1: memref<1xi32, #tpu.memory_space<smem>>) -> (i32, i32) {
    %c0_i32 = arith.constant 0 : i32
    %c0_i32_0 = arith.constant 0 : i32
    return %arg0, %c0_i32 : i32, i32
  }
  func.func @transform_1(%arg0: i32, %arg1: memref<1xi32, #tpu.memory_space<smem>>) -> (i32, i32) {
    %c0_i32 = arith.constant 0 : i32
    %c0_i32_0 = arith.constant 0 : i32
    %c0_i32_1 = arith.constant 0 : i32
    return %c0_i32, %c0_i32_0 : i32, i32
  }
  func.func @transform_2(%arg0: i32, %arg1: memref<1xi32, #tpu.memory_space<smem>>) -> (i32, i32) {
    %c0_i32 = arith.constant 0 : i32
    %c0_i32_0 = arith.constant 0 : i32
    %c0_i32_1 = arith.constant 0 : i32
    return %c0_i32, %c0_i32_0 : i32, i32
  }
  func.func @transform_3(%arg0: i32, %arg1: memref<1xi32, #tpu.memory_space<smem>>) -> (i32, i32) {
    %c0_i32 = arith.constant 0 : i32
    %c0_i32_0 = arith.constant 0 : i32
    %c0_i32_1 = arith.constant 0 : i32
    return %c0_i32, %c0_i32_0 : i32, i32
  }
  func.func @transform_4(%arg0: i32, %arg1: memref<1xi32, #tpu.memory_space<smem>>) -> (i32, i32) {
    %c0_i32 = arith.constant 0 : i32
    %c0_i32_0 = arith.constant 0 : i32
    %c0_i32_1 = arith.constant 0 : i32
    return %c0_i32, %c0_i32_0 : i32, i32
  }
  func.func @transform_5(%arg0: i32, %arg1: memref<1xi32, #tpu.memory_space<smem>>) -> (i32, i32) {
    %c0_i32 = arith.constant 0 : i32
    %c0_i32_0 = arith.constant 0 : i32
    %c0_i32_1 = arith.constant 0 : i32
    return %c0_i32, %c0_i32_0 : i32, i32
  }
  func.func @transform_6(%arg0: i32, %arg1: memref<1xi32, #tpu.memory_space<smem>>) -> (i32, i32) {
    %c0_i32 = arith.constant 0 : i32
    %c0_i32_0 = arith.constant 0 : i32
    %c0_i32_1 = arith.constant 0 : i32
    return %c0_i32, %c0_i32_0 : i32, i32
  }
  func.func @transform_7(%arg0: i32, %arg1: memref<1xi32, #tpu.memory_space<smem>>) -> (i32, i32) {
    %c0_i32 = arith.constant 0 : i32
    %c0_i32_0 = arith.constant 0 : i32
    return %arg0, %c0_i32 : i32, i32
  }
  func.func @transform_8(%arg0: i32, %arg1: memref<1xi32, #tpu.memory_space<smem>>) -> (i32, i32) {
    %c0_i32 = arith.constant 0 : i32
    %c0_i32_0 = arith.constant 0 : i32
    %c0_i32_1 = arith.constant 0 : i32
    return %c0_i32, %c0_i32_0 : i32, i32
  }
  func.func @transform_9(%arg0: i32, %arg1: memref<1xi32, #tpu.memory_space<smem>>) -> (i32, i32) {
    %c0_i32 = arith.constant 0 : i32
    %c0_i32_0 = arith.constant 0 : i32
    %c0_i32_1 = arith.constant 0 : i32
    return %c0_i32, %c0_i32_0 : i32, i32
  }
}

</mosaic_0001>

<llo_original>
// kernel: tpu_custom_call.1
$region0: #{tpu_custom_call.1}
  #allocation0 [shape = 'u32[]', space=smem, size = 0x4, offset = 0x4, fixed_abs, tag = 'smem constant byte address 0x4 - core index']
  #allocation1 [shape = 'u32[144,128]{1,0:T(1,128)}', space=vmem, size = 0x12000, scoped, tag = 'internal scratch']
  #allocation2 [shape = 's32[1]{0}', space=sflag, size = 0x4, scoped, tag = 'scoped memory for tpu_custom_call.1']
  #allocation3 [shape = 's32[1]{0:T(128)S(6)}', space=smem, size = 0x200, scoped, tag = 'prefetched SMEM operand 0']
  %s0 = inlined_call_operand.<no memory space> [shape: s32[1], index: 0, kind: input, shape index: {}]
  %s1 = inlined_call_operand.hbm [shape: f32[8,16], index: 1, kind: input, shape index: {}]
  %s2 = inlined_call_operand.hbm [shape: f32[16,128], index: 2, kind: input, shape index: {}]
  %s3 = inlined_call_operand.vmem [shape: f32[1,128], index: 3, kind: input, shape index: {}]
  %s4 = inlined_call_operand.hbm [shape: f32[128,128], index: 4, kind: input, shape index: {}]
  %s5 = inlined_call_operand.vmem [shape: f32[1,128], index: 5, kind: input, shape index: {}]
  %s6 = inlined_call_operand.hbm [shape: f32[128,128], index: 6, kind: input, shape index: {}]
  %s7 = inlined_call_operand.vmem [shape: f32[1,128], index: 7, kind: input, shape index: {}]
  %s8 = inlined_call_operand.hbm [shape: f32[8,128], index: 8, kind: output, shape index: {0}]
  %s9 = inlined_call_operand.hbm [shape: f32[1,128], index: 9, kind: output, shape index: {1}]
  %s10 = inlined_call_operand.hbm [shape: f32[1,128], index: 10, kind: output, shape index: {2}]
  %11 = xla_tuple %s8, %s9, %s10
  %s12 = sld [smem:[#allocation0]]
  $region74: #{tpu_custom_call.1} parent=0
    _
  %s14 = ssub.s32 1, %s12
  %s15 = scalar_select 0, %s14, %s12
  %16 = sst [smem:[#allocation3]] %s0
  $region1: #{tpu_custom_call.1} parent=0
    #allocation4 [shape = 'u8[4096]{0}', space=vmem, size = 0x1000, scoped, tag = 'input window, operand 1, single buffered']
    #allocation5 [shape = 's32[1]{0}', space=sflag, size = 0x4, scoped, tag = 'scoped memory for tpu_custom_call.1']
    #allocation6 [shape = 's32[1]{0}', space=sflag, size = 0x4, scoped, tag = 'scoped memory for tpu_custom_call.1']
    #allocation7 [shape = 'u8[8192]{0}', space=vmem, size = 0x2000, scoped, tag = 'input window, operand 2, single buffered']
    #allocation8 [shape = 's32[1]{0}', space=sflag, size = 0x4, scoped, tag = 'scoped memory for tpu_custom_call.1']
    #allocation9 [shape = 'u8[65536]{0}', space=vmem, size = 0x10000, scoped, tag = 'input window, operand 4, single buffered']
    #allocation10 [shape = 'u8[65536]{0}', space=vmem, size = 0x10000, scoped, tag = 'input window, operand 6, single buffered']
    #allocation11 [shape = 's32[1]{0}', space=sflag, size = 0x4, scoped, tag = 'scoped memory for tpu_custom_call.1']
    #allocation12 [shape = 'u8[4096]{0}', space=vmem, size = 0x1000, scoped, tag = 'output window, operand 0, single buffered']
    #allocation13 [shape = 'u8[512]{0}', space=vmem, size = 0x400, scoped, tag = 'output window, operand 1, single buffered']
    #allocation14 [shape = 's32[1]{0}', space=sflag, size = 0x4, scoped, tag = 'scoped memory for tpu_custom_call.1']
    #allocation15 [shape = 'u8[512]{0}', space=vmem, size = 0x400, scoped, tag = 'output window, operand 2, single buffered']
    %17 = vsyncpa [#allocation5], 0
    %18 = vsyncpa [#allocation8], 0
    %19 = vsyncpa [#allocation11], 0
    %20 = vsyncpa [#allocation6], 0
    %21 = vsyncpa [#allocation14], 0
    // Predicated region
    $region2: #{tpu_custom_call.1} parent=1 // pred_check
      _
    $region3: #{tpu_custom_call.1} parent=1 // pred_check_branch
      %23 = sbr.rel (0) target = $region5
    $region4: #{tpu_custom_call.1} parent=1 // pred_region
      %s25 = ssub.s32 128, 128
      %26 = vsyncadd [#allocation5], %s25
      %s28 = sshll.u32 [#allocation4], 4
      %s29 = int_to_ptr.vmem [resolvable:$true] %s28
      %31 = dma.hbm_to_vmem [thread:$0]  %s1, 128, %s29, [#allocation5]
    $region5: #{tpu_custom_call.1} parent=1 // pred_fallthru
      _
    // Predicated region
    $region6: #{tpu_custom_call.1} parent=1 // pred_check
      _
    $region7: #{tpu_custom_call.1} parent=1 // pred_check_branch
      %33 = sbr.rel (0) target = $region9
    $region8: #{tpu_custom_call.1} parent=1 // pred_region
      %s35 = ssub.s32 256, 256
      %36 = vsyncadd [#allocation8], %s35
      %s37 = sshll.u32 [#allocation7], 4
      %s38 = int_to_ptr.vmem [resolvable:$true] %s37
      %43 = dma.hbm_to_vmem [thread:$0]  %s2, 256, %s38, [#allocation8], 128, 128, 8
    $region9: #{tpu_custom_call.1} parent=1 // pred_fallthru
      _
    // Predicated region
    $region10: #{tpu_custom_call.1} parent=1 // pred_check
      _
    $region11: #{tpu_custom_call.1} parent=1 // pred_check_branch
      %45 = sbr.rel (0) target = $region13
    $region12: #{tpu_custom_call.1} parent=1 // pred_region
      _
    $region13: #{tpu_custom_call.1} parent=1 // pred_fallthru
      _
    // Predicated region
    $region14: #{tpu_custom_call.1} parent=1 // pred_check
      _
    $region15: #{tpu_custom_call.1} parent=1 // pred_check_branch
      %47 = sbr.rel (0) target = $region17
    $region16: #{tpu_custom_call.1} parent=1 // pred_region
      %s49 = ssub.s32 2048, 2048
      %50 = vsyncadd [#allocation8], %s49
      %s51 = sshll.u32 [#allocation9], 4
      %s52 = int_to_ptr.vmem [resolvable:$true] %s51
      %57 = dma.hbm_to_vmem [thread:$0]  %s4, 2048, %s52, [#allocation8], 128, 128, 8
    $region17: #{tpu_custom_call.1} parent=1 // pred_fallthru
      _
    // Predicated region
    $region18: #{tpu_custom_call.1} parent=1 // pred_check
      _
    $region19: #{tpu_custom_call.1} parent=1 // pred_check_branch
      %59 = sbr.rel (0) target = $region21
    $region20: #{tpu_custom_call.1} parent=1 // pred_region
      _
    $region21: #{tpu_custom_call.1} parent=1 // pred_fallthru
      _
    // Predicated region
    $region22: #{tpu_custom_call.1} parent=1 // pred_check
      _
    $region23: #{tpu_custom_call.1} parent=1 // pred_check_branch
      %61 = sbr.rel (0) target = $region25
    $region24: #{tpu_custom_call.1} parent=1 // pred_region
      %s63 = ssub.s32 2048, 2048
      %64 = vsyncadd [#allocation11], %s63
      %s65 = sshll.u32 [#allocation10], 4
      %s66 = int_to_ptr.vmem [resolvable:$true] %s65
      %71 = dma.hbm_to_vmem [thread:$0]  %s6, 2048, %s66, [#allocation11], 128, 128, 8
    $region25: #{tpu_custom_call.1} parent=1 // pred_fallthru
      _
    // Predicated region
    $region26: #{tpu_custom_call.1} parent=1 // pred_check
      _
    $region27: #{tpu_custom_call.1} parent=1 // pred_check_branch
      %73 = sbr.rel (0) target = $region29
    $region28: #{tpu_custom_call.1} parent=1 // pred_region
      _
    $region29: #{tpu_custom_call.1} parent=1 // pred_fallthru
      _
    // Predicated region
    $region30: #{tpu_custom_call.1} parent=1 // pred_check
      _
    $region31: #{tpu_custom_call.1} parent=1 // pred_check_branch
      %75 = sbr.rel (0) target = $region33
    $region32: #{tpu_custom_call.1} parent=1 // pred_region
      %76 = dma.done [#allocation5], 128
    $region33: #{tpu_custom_call.1} parent=1 // pred_fallthru
      _
    // Predicated region
    $region34: #{tpu_custom_call.1} parent=1 // pred_check
      _
    $region35: #{tpu_custom_call.1} parent=1 // pred_check_branch
      %78 = sbr.rel (0) target = $region37
    $region36: #{tpu_custom_call.1} parent=1 // pred_region
      %79 = dma.done [#allocation8], 256
    $region37: #{tpu_custom_call.1} parent=1 // pred_fallthru
      _
    // Predicated region
    $region38: #{tpu_custom_call.1} parent=1 // pred_check
      _
    $region39: #{tpu_custom_call.1} parent=1 // pred_check_branch
      %81 = sbr.rel (0) target = $region41
    $region40: #{tpu_custom_call.1} parent=1 // pred_region
      %82 = dma.done [#allocation8], 2048
    $region41: #{tpu_custom_call.1} parent=1 // pred_fallthru
      _
    // Predicated region
    $region42: #{tpu_custom_call.1} parent=1 // pred_check
      _
    $region43: #{tpu_custom_call.1} parent=1 // pred_check_branch
      %84 = sbr.rel (0) target = $region45
    $region44: #{tpu_custom_call.1} parent=1 // pred_region
      %85 = dma.done [#allocation11], 2048
    $region45: #{tpu_custom_call.1} parent=1 // pred_fallthru
      _
    %p86 = scmp.eq.s32.totalorder 0, 0
    // Predicated region
    $region46: #{tpu_custom_call.1} parent=1 // pred_check
      %p87 = pneg %p86
    $region47: #{tpu_custom_call.1} parent=1 // pred_check_branch
      %89 = sbr.rel (%p87) target = $region49
    $region48: #{tpu_custom_call.1} parent=1 // pred_region
      %90 = vst [vmem:[#allocation13] sm:$0x1] 0.0
      %91 = vst [vmem:[#allocation15] sm:$0x1] 0.0
    $region49: #{tpu_custom_call.1} parent=1 // pred_fallthru
      _
    %v92 = vld [vmem:[#allocation7] sm:$0xff]
    %v93 = vld [vmem:[#allocation7 + $0x8] sm:$0xff]
    %v94 = vld [vmem:[#allocation9] sm:$0xff]
    %v95 = vld [vmem:[#allocation9 + $0x8] sm:$0xff]
    %v96 = vld [vmem:[#allocation9 + $0x10] sm:$0xff]
    %v97 = vld [vmem:[#allocation9 + $0x18] sm:$0xff]
    %v98 = vld [vmem:[#allocation9 + $0x20] sm:$0xff]
    %v99 = vld [vmem:[#allocation9 + $0x28] sm:$0xff]
    %v100 = vld [vmem:[#allocation9 + $0x30] sm:$0xff]
    %v101 = vld [vmem:[#allocation9 + $0x38] sm:$0xff]
    %v102 = vld [vmem:[#allocation9 + $0x40] sm:$0xff]
    %v103 = vld [vmem:[#allocation9 + $0x48] sm:$0xff]
    %v104 = vld [vmem:[#allocation9 + $0x50] sm:$0xff]
    %v105 = vld [vmem:[#allocation9 + $0x58] sm:$0xff]
    %v106 = vld [vmem:[#allocation9 + $0x60] sm:$0xff]
    %v107 = vld [vmem:[#allocation9 + $0x68] sm:$0xff]
    %v108 = vld [vmem:[#allocation9 + $0x70] sm:$0xff]
    %v109 = vld [vmem:[#allocation9 + $0x78] sm:$0xff]
    %v110 = vld [vmem:[#allocation10] sm:$0xff]
    %v111 = vld [vmem:[#allocation10 + $0x8] sm:$0xff]
    %v112 = vld [vmem:[#allocation10 + $0x10] sm:$0xff]
    %v113 = vld [vmem:[#allocation10 + $0x18] sm:$0xff]
    %v114 = vld [vmem:[#allocation10 + $0x20] sm:$0xff]
    %v115 = vld [vmem:[#allocation10 + $0x28] sm:$0xff]
    %v116 = vld [vmem:[#allocation10 + $0x30] sm:$0xff]
    %v117 = vld [vmem:[#allocation10 + $0x38] sm:$0xff]
    %v118 = vld [vmem:[#allocation10 + $0x40] sm:$0xff]
    %v119 = vld [vmem:[#allocation10 + $0x48] sm:$0xff]
    %v120 = vld [vmem:[#allocation10 + $0x50] sm:$0xff]
    %v121 = vld [vmem:[#allocation10 + $0x58] sm:$0xff]
    %v122 = vld [vmem:[#allocation10 + $0x60] sm:$0xff]
    %v123 = vld [vmem:[#allocation10 + $0x68] sm:$0xff]
    %v124 = vld [vmem:[#allocation10 + $0x70] sm:$0xff]
    %v125 = vld [vmem:[#allocation10 + $0x78] sm:$0xff]
    %v126 = vld [vmem:[%s3] sm:$0x1]
    %v127 = vld [vmem:[%s5] sm:$0x1]
    %v128 = vld [vmem:[%s7] sm:$0x1]
    %v129 = vld [vmem:[#allocation4] sm:$0xff]
    %v131 = vlaneseq
    %v132 = vshrl.u32 %v131, 7
    %v133 = vsub.s32 0, %v132
    %v134 = vrot.slane %v126, %v133
    %vm136 = vcmask 130048
    %v138 = vsel %vm136, %v129, 0
    %140 = vmatprep.subr.mxu0 0.0
    %141 = vmatpush1.msra.mxu0 %v92
    %142 = vmatprep.subr.mxu0 0.0
    %143 = vmatpush1.msra.mxu0 %v93
    %144 = vmatprep.subr.mxu0 0.0
    %145 = vmatpush1.msra.mxu0 0.0
    %146 = vmatprep.subr.mxu0 0.0
    %147 = vmatpush1.msra.mxu0 0.0
    %148 = vmatprep.subr.mxu0 0.0
    %149 = vmatpush1.msra.mxu0 0.0
    %150 = vmatprep.subr.mxu0 0.0
    %151 = vmatpush1.msra.mxu0 0.0
    %152 = vmatprep.subr.mxu0 0.0
    %153 = vmatpush1.msra.mxu0 0.0
    %154 = vmatprep.subr.mxu0 0.0
    %155 = vmatpush1.msra.mxu0 0.0
    %156 = vmatprep.subr.mxu0 0.0
    %157 = vmatpush1.msra.mxu0 0.0
    %158 = vmatprep.subr.mxu0 0.0
    %159 = vmatpush1.msra.mxu0 0.0
    %160 = vmatprep.subr.mxu0 0.0
    %161 = vmatpush1.msra.mxu0 0.0
    %162 = vmatprep.subr.mxu0 0.0
    %163 = vmatpush1.msra.mxu0 0.0
    %164 = vmatprep.subr.mxu0 0.0
    %165 = vmatpush1.msra.mxu0 0.0
    %166 = vmatprep.subr.mxu0 0.0
    %167 = vmatpush1.msra.mxu0 0.0
    %168 = vmatprep.subr.mxu0 0.0
    %169 = vmatpush1.msra.mxu0 0.0
    %170 = vmatprep.subr.mxu0 0.0
    %171 = vmatpush1.msra.mxu0 0.0
    %172 = vmatprep.subr.mxu0 0.0
    %173 = vmatpush1.msra.mxu0 0.0
    %174 = vmatprep.subr.mxu0 0.0
    %175 = vmatpush1.msra.mxu0 0.0
    %176 = vmatprep.subr.mxu0 0.0
    %177 = vmatpush1.msra.mxu0 0.0
    %178 = vmatprep.subr.mxu0 0.0
    %179 = vmatpush1.msra.mxu0 0.0
    %180 = vmatprep.subr.mxu0 0.0
    %181 = vmatpush1.msra.mxu0 0.0
    %182 = vmatprep.subr.mxu0 0.0
    %183 = vmatpush1.msra.mxu0 0.0
    %184 = vmatprep.subr.mxu0 0.0
    %185 = vmatpush1.msra.mxu0 0.0
    %186 = vmatprep.subr.mxu0 0.0
    %187 = vmatpush1.msra.mxu0 0.0
    %188 = vmatprep.subr.mxu0 0.0
    %189 = vmatpush1.msra.mxu0 0.0
    %190 = vmatprep.subr.mxu0 0.0
    %191 = vmatpush1.msra.mxu0 0.0
    %192 = vmatprep.subr.mxu0 0.0
    %193 = vmatpush1.msra.mxu0 0.0
    %194 = vmatprep.subr.mxu0 0.0
    %195 = vmatpush1.msra.mxu0 0.0
    %196 = vmatprep.subr.mxu0 0.0
    %197 = vmatpush1.msra.mxu0 0.0
    %198 = vmatprep.subr.mxu0 0.0
    %199 = vmatpush1.msra.mxu0 0.0
    %200 = vmatprep.subr.mxu0 0.0
    %201 = vmatpush1.msra.mxu0 0.0
    %202 = vmatprep.subr.mxu0 0.0
    %203 = vmatpush1.msra.mxu0 0.0
    %204 = vmatprep.mubr.f32.mxu0 0.0
    %205 = vmatmul.mubr.f32.gmra.mrb[0].mxu0 %v138
    %v206 = vpop.f32.mrb[0].mxu0
    %v207 = vadd.f32 %v134, %v206
    %v208 = vpop.f32.mrb[0].mxu0
    %209 = vdwg.mxu0
    %v210 = vmax.f32 %v207, 0.0
    %v212 = vlaneseq
    %v213 = vshrl.u32 %v212, 7
    %v214 = vsub.s32 0, %v213
    %v215 = vrot.slane %v127, %v214
    %217 = vmatprep.subr.mxu0 0.0
    %218 = vmatpush1.msra.mxu0 %v94
    %219 = vmatprep.subr.mxu0 0.0
    %220 = vmatpush1.msra.mxu0 %v95
    %221 = vmatprep.subr.mxu0 0.0
    %222 = vmatpush1.msra.mxu0 %v96
    %223 = vmatprep.subr.mxu0 0.0
    %224 = vmatpush1.msra.mxu0 %v97
    %225 = vmatprep.subr.mxu0 0.0
    %226 = vmatpush1.msra.mxu0 %v98
    %227 = vmatprep.subr.mxu0 0.0
    %228 = vmatpush1.msra.mxu0 %v99
    %229 = vmatprep.subr.mxu0 0.0
    %230 = vmatpush1.msra.mxu0 %v100
    %231 = vmatprep.subr.mxu0 0.0
    %232 = vmatpush1.msra.mxu0 %v101
    %233 = vmatprep.subr.mxu0 0.0
    %234 = vmatpush1.msra.mxu0 %v102
    %235 = vmatprep.subr.mxu0 0.0
    %236 = vmatpush1.msra.mxu0 %v103
    %237 = vmatprep.subr.mxu0 0.0
    %238 = vmatpush1.msra.mxu0 %v104
    %239 = vmatprep.subr.mxu0 0.0
    %240 = vmatpush1.msra.mxu0 %v105
    %241 = vmatprep.subr.mxu0 0.0
    %242 = vmatpush1.msra.mxu0 %v106
    %243 = vmatprep.subr.mxu0 0.0
    %244 = vmatpush1.msra.mxu0 %v107
    %245 = vmatprep.subr.mxu0 0.0
    %246 = vmatpush1.msra.mxu0 %v108
    %247 = vmatprep.subr.mxu0 0.0
    %248 = vmatpush1.msra.mxu0 %v109
    %249 = vmatprep.subr.mxu0 0.0
    %250 = vmatpush1.msra.mxu0 0.0
    %251 = vmatprep.subr.mxu0 0.0
    %252 = vmatpush1.msra.mxu0 0.0
    %253 = vmatprep.subr.mxu0 0.0
    %254 = vmatpush1.msra.mxu0 0.0
    %255 = vmatprep.subr.mxu0 0.0
    %256 = vmatpush1.msra.mxu0 0.0
    %257 = vmatprep.subr.mxu0 0.0
    %258 = vmatpush1.msra.mxu0 0.0
    %259 = vmatprep.subr.mxu0 0.0
    %260 = vmatpush1.msra.mxu0 0.0
    %261 = vmatprep.subr.mxu0 0.0
    %262 = vmatpush1.msra.mxu0 0.0
    %263 = vmatprep.subr.mxu0 0.0
    %264 = vmatpush1.msra.mxu0 0.0
    %265 = vmatprep.subr.mxu0 0.0
    %266 = vmatpush1.msra.mxu0 0.0
    %267 = vmatprep.subr.mxu0 0.0
    %268 = vmatpush1.msra.mxu0 0.0
    %269 = vmatprep.subr.mxu0 0.0
    %270 = vmatpush1.msra.mxu0 0.0
    %271 = vmatprep.subr.mxu0 0.0
    %272 = vmatpush1.msra.mxu0 0.0
    %273 = vmatprep.subr.mxu0 0.0
    %274 = vmatpush1.msra.mxu0 0.0
    %275 = vmatprep.subr.mxu0 0.0
    %276 = vmatpush1.msra.mxu0 0.0
    %277 = vmatprep.subr.mxu0 0.0
    %278 = vmatpush1.msra.mxu0 0.0
    %279 = vmatprep.subr.mxu0 0.0
    %280 = vmatpush1.msra.mxu0 0.0
    %281 = vmatprep.mubr.f32.mxu0 0.0
    %282 = vmatmul.mubr.f32.gmra.mrb[0].mxu0 %v210
    %v283 = vpop.f32.mrb[0].mxu0
    %v284 = vadd.f32 %v215, %v283
    %v285 = vpop.f32.mrb[0].mxu0
    %286 = vdwg.mxu0
    %v287 = vmax.f32 %v284, 0.0
    %v289 = vlaneseq
    %v290 = vshrl.u32 %v289, 7
    %v291 = vsub.s32 0, %v290
    %v292 = vrot.slane %v128, %v291
    %294 = vmatprep.subr.mxu0 0.0
    %295 = vmatpush1.msra.mxu0 %v110
    %296 = vmatprep.subr.mxu0 0.0
    %297 = vmatpush1.msra.mxu0 %v111
    %298 = vmatprep.subr.mxu0 0.0
    %299 = vmatpush1.msra.mxu0 %v112
    %300 = vmatprep.subr.mxu0 0.0
    %301 = vmatpush1.msra.mxu0 %v113
    %302 = vmatprep.subr.mxu0 0.0
    %303 = vmatpush1.msra.mxu0 %v114
    %304 = vmatprep.subr.mxu0 0.0
    %305 = vmatpush1.msra.mxu0 %v115
    %306 = vmatprep.subr.mxu0 0.0
    %307 = vmatpush1.msra.mxu0 %v116
    %308 = vmatprep.subr.mxu0 0.0
    %309 = vmatpush1.msra.mxu0 %v117
    %310 = vmatprep.subr.mxu0 0.0
    %311 = vmatpush1.msra.mxu0 %v118
    %312 = vmatprep.subr.mxu0 0.0
    %313 = vmatpush1.msra.mxu0 %v119
    %314 = vmatprep.subr.mxu0 0.0
    %315 = vmatpush1.msra.mxu0 %v120
    %316 = vmatprep.subr.mxu0 0.0
    %317 = vmatpush1.msra.mxu0 %v121
    %318 = vmatprep.subr.mxu0 0.0
    %319 = vmatpush1.msra.mxu0 %v122
    %320 = vmatprep.subr.mxu0 0.0
    %321 = vmatpush1.msra.mxu0 %v123
    %322 = vmatprep.subr.mxu0 0.0
    %323 = vmatpush1.msra.mxu0 %v124
    %324 = vmatprep.subr.mxu0 0.0
    %325 = vmatpush1.msra.mxu0 %v125
    %326 = vmatprep.subr.mxu0 0.0
    %327 = vmatpush1.msra.mxu0 0.0
    %328 = vmatprep.subr.mxu0 0.0
    %329 = vmatpush1.msra.mxu0 0.0
    %330 = vmatprep.subr.mxu0 0.0
    %331 = vmatpush1.msra.mxu0 0.0
    %332 = vmatprep.subr.mxu0 0.0
    %333 = vmatpush1.msra.mxu0 0.0
    %334 = vmatprep.subr.mxu0 0.0
    %335 = vmatpush1.msra.mxu0 0.0
    %336 = vmatprep.subr.mxu0 0.0
    %337 = vmatpush1.msra.mxu0 0.0
    %338 = vmatprep.subr.mxu0 0.0
    %339 = vmatpush1.msra.mxu0 0.0
    %340 = vmatprep.subr.mxu0 0.0
    %341 = vmatpush1.msra.mxu0 0.0
    %342 = vmatprep.subr.mxu0 0.0
    %343 = vmatpush1.msra.mxu0 0.0
    %344 = vmatprep.subr.mxu0 0.0
    %345 = vmatpush1.msra.mxu0 0.0
    %346 = vmatprep.subr.mxu0 0.0
    %347 = vmatpush1.msra.mxu0 0.0
    %348 = vmatprep.subr.mxu0 0.0
    %349 = vmatpush1.msra.mxu0 0.0
    %350 = vmatprep.subr.mxu0 0.0
    %351 = vmatpush1.msra.mxu0 0.0
    %352 = vmatprep.subr.mxu0 0.0
    %353 = vmatpush1.msra.mxu0 0.0
    %354 = vmatprep.subr.mxu0 0.0
    %355 = vmatpush1.msra.mxu0 0.0
    %356 = vmatprep.subr.mxu0 0.0
    %357 = vmatpush1.msra.mxu0 0.0
    %358 = vmatprep.mubr.f32.mxu0 0.0
    %359 = vmatmul.mubr.f32.gmra.mrb[0].mxu0 %v287
    %v360 = vpop.f32.mrb[0].mxu0
    %v361 = vadd.f32 %v292, %v360
    %v362 = vpop.f32.mrb[0].mxu0
    %363 = vdwg.mxu0
    %364 = vst [vmem:[#allocation12] sm:$0xff] %v361
    %s365 = sld [smem:[#allocation3]]
    %v366 = vlaneseq
    %v367 = vshrl.u32 %v366, 7
    %s368 = smul.u32 0, 8
    %v369 = vstv %s368
    %v370 = vadd.s32 %v367, %v369
    %v371 = vstv %s365
    %vm372 = vcmp.lt.s32.totalorder %v370, %v371
    %v373 = vsel %vm372, %v361, 0.0
    %v374 = vld [vmem:[#allocation13] sm:$0x1]
    %v375 = vrot.slane %v373, 4
    %v376 = vadd.f32 %v373, %v375
    %v377 = vrot.slane %v376, 2
    %v378 = vadd.f32 %v376, %v377
    %v379 = vrot.slane %v378, 1
    %v380 = vadd.f32 %v378, %v379
    %v381 = vadd.f32 %v374, %v380
    %382 = vst [vmem:[#allocation13] sm:$0x1] %v381
    %v383 = vld [vmem:[#allocation15] sm:$0x1]
    %v384 = vmul.f32 %v373, %v373
    %v385 = vrot.slane %v384, 4
    %v386 = vadd.f32 %v384, %v385
    %v387 = vrot.slane %v386, 2
    %v388 = vadd.f32 %v386, %v387
    %v389 = vrot.slane %v388, 1
    %v390 = vadd.f32 %v388, %v389
    %v391 = vadd.f32 %v383, %v390
    %392 = vst [vmem:[#allocation15] sm:$0x1] %v391
    // Predicated region
    $region50: #{tpu_custom_call.1} parent=1 // pred_check
      _
    $region51: #{tpu_custom_call.1} parent=1 // pred_check_branch
      %394 = sbr.rel (0) target = $region53
    $region52: #{tpu_custom_call.1} parent=1 // pred_region
      %s396 = ssub.s32 128, 128
      %397 = vsyncadd [#allocation6], %s396
      %s399 = sshll.u32 [#allocation12], 4
      %s400 = int_to_ptr.vmem [resolvable:$true] %s399
      %402 = dma.vmem_to_hbm [thread:$0]  %s400, 128, %s8, [#allocation6]
    $region53: #{tpu_custom_call.1} parent=1 // pred_fallthru
      _
    // Predicated region
    $region54: #{tpu_custom_call.1} parent=1 // pred_check
      _
    $region55: #{tpu_custom_call.1} parent=1 // pred_check_branch
      %404 = sbr.rel (0) target = $region57
    $region56: #{tpu_custom_call.1} parent=1 // pred_region
      %s406 = ssub.s32 16, 16
      %407 = vsyncadd [#allocation14], %s406
      %s409 = sshll.u32 [#allocation13], 4
      %s410 = int_to_ptr.vmem [resolvable:$true] %s409
      %412 = dma.vmem_to_hbm [thread:$0]  %s410, 16, %s9, [#allocation14]
    $region57: #{tpu_custom_call.1} parent=1 // pred_fallthru
      _
    // Predicated region
    $region58: #{tpu_custom_call.1} parent=1 // pred_check
      _
    $region59: #{tpu_custom_call.1} parent=1 // pred_check_branch
      %414 = sbr.rel (0) target = $region61
    $region60: #{tpu_custom_call.1} parent=1 // pred_region
      %s416 = ssub.s32 16, 16
      %417 = vsyncadd [#allocation14], %s416
      %s419 = sshll.u32 [#allocation15], 4
      %s420 = int_to_ptr.vmem [resolvable:$true] %s419
      %422 = dma.vmem_to_hbm [thread:$0]  %s420, 16, %s10, [#allocation14]
    $region61: #{tpu_custom_call.1} parent=1 // pred_fallthru
      _
    // Predicated region
    $region62: #{tpu_custom_call.1} parent=1 // pred_check
      _
    $region63: #{tpu_custom_call.1} parent=1 // pred_check_branch
      %424 = sbr.rel (0) target = $region65
    $region64: #{tpu_custom_call.1} parent=1 // pred_region
      %425 = dma.done [#allocation6], 128
    $region65: #{tpu_custom_call.1} parent=1 // pred_fallthru
      _
    // Predicated region
    $region66: #{tpu_custom_call.1} parent=1 // pred_check
      _
    $region67: #{tpu_custom_call.1} parent=1 // pred_check_branch
      %427 = sbr.rel (0) target = $region69
    $region68: #{tpu_custom_call.1} parent=1 // pred_region
      %428 = dma.done [#allocation14], 16
    $region69: #{tpu_custom_call.1} parent=1 // pred_fallthru
      _
    // Predicated region
    $region70: #{tpu_custom_call.1} parent=1 // pred_check
      _
    $region71: #{tpu_custom_call.1} parent=1 // pred_check_branch
      %430 = sbr.rel (0) target = $region73
    $region72: #{tpu_custom_call.1} parent=1 // pred_region
      %431 = dma.done [#allocation14], 16
    $region73: #{tpu_custom_call.1} parent=1 // pred_fallthru
      _
    %432 = vsyncpa [#allocation5], 1
    %433 = vsyncpa [#allocation8], 1
    %434 = vsyncpa [#allocation11], 1
    %435 = vsyncpa [#allocation6], 1
    %436 = vsyncpa [#allocation14], 1

</llo_original>
